<compile_context>
chip_gen: v6e
topology: v6e:2x2x1
jax: 0.10.0
libtpu: 0.0.40
codegen_flags: <defaults>
</compile_context>

<pallas_src>
import jax
import jax.numpy as jnp
from jax.experimental import pallas as pl
from jax.experimental.pallas import tpu as pltpu


def _round_up(v, m):
    return ((v + m - 1) // m) * m


def _swiglu_kernel(x_ref, w1_ref, b1_ref, w2_ref, b2_ref, o_ref):
    x = x_ref[...]
    # Two projections on the MXU, f32 accumulation; bias add in f32 (VPU).
    h1 = jnp.dot(x, w1_ref[...], preferred_element_type=jnp.float32) + b1_ref[...]
    h2 = jnp.dot(x, w2_ref[...], preferred_element_type=jnp.float32) + b2_ref[...]
    # sigmoid(h2) = 1 / (1 + exp(-h2)): exp and the approximate reciprocal both
    # lower to the EUP slot, keeping the divide off the 4-wide VALU.
    gate = pl.reciprocal(1.0 + jnp.exp(-h2), approx=True)
    o_ref[...] = (h1 * gate).astype(o_ref.dtype)


def llama_swiglu(x, w1, b1, w2, b2, *, tm=256, tn=256,
                 compute_dtype=jnp.bfloat16):
    """SwiGLU: (x @ w1 + b1) * sigmoid(x @ w2 + b2).

    x  : (..., K)
    w_i: (K, N)   (already transposed from PyTorch's (N, K))
    b_i: (N,)
    """
    orig_shape = x.shape
    out_dtype = x.dtype
    K = orig_shape[-1]
    N = w1.shape[1]
    x2d = x.reshape(-1, K)
    M = x2d.shape[0]

    # Tile sizes: lane (last) axis multiple of 128, sublane axis multiple of 8.
    tm = min(tm, _round_up(M, 8))
    tn = min(tn, _round_up(N, 128))
    M_pad = _round_up(M, tm)
    N_pad = _round_up(N, tn)

    # bf16 operands into the MXU; biases stay f32 (added onto the f32 accumulator).
    x2d = x2d.astype(compute_dtype)
    w1c = w1.astype(compute_dtype)
    w2c = w2.astype(compute_dtype)
    b1f = b1.astype(jnp.float32).reshape(1, N)
    b2f = b2.astype(jnp.float32).reshape(1, N)

    if M_pad != M:
        x2d = jnp.pad(x2d, ((0, M_pad - M), (0, 0)))
    if N_pad != N:
        w1c = jnp.pad(w1c, ((0, 0), (0, N_pad - N)))
        w2c = jnp.pad(w2c, ((0, 0), (0, N_pad - N)))
        b1f = jnp.pad(b1f, ((0, 0), (0, N_pad - N)))
        b2f = jnp.pad(b2f, ((0, 0), (0, N_pad - N)))

    # N axis OUTER, M axis inner -> weight tiles (index depends only on n) are
    # fetched once per N tile and stay resident across the whole M sweep.
    grid = (N_pad // tn, M_pad // tm)

    # VMEM budget: double-buffered x / w1 / w2 / bias / out tiles + f32 live values.
    bpe = jnp.dtype(compute_dtype).itemsize
    obpe = jnp.dtype(out_dtype).itemsize
    vmem_est = 2 * (tm * K * bpe + 2 * K * tn * bpe + 2 * tn * 4 + tm * tn * obpe)
    vmem_est += 4 * tm * tn * 4  # h1 / h2 / gate / product intermediates (f32)
    vmem_limit = int(min(max(2 * vmem_est, 32 * 1024 * 1024), 64 * 1024 * 1024))

    cost = pl.CostEstimate(
        flops=4 * M_pad * K * N_pad,                 # two M*K*N matmuls
        transcendentals=M_pad * N_pad,               # exp per output element
        bytes_accessed=(M_pad * K * bpe + 2 * K * N_pad * bpe
                        + 2 * N_pad * 4 + M_pad * N_pad * obpe),
    )

    out = pl.pallas_call(
        _swiglu_kernel,
        out_shape=jax.ShapeDtypeStruct((M_pad, N_pad), out_dtype),
        grid_spec=pltpu.PrefetchScalarGridSpec(
            num_scalar_prefetch=0,
            grid=grid,
            in_specs=[
                pl.BlockSpec((tm, K), lambda n, m: (m, 0)),   # x row-tile
                pl.BlockSpec((K, tn), lambda n, m: (0, n)),   # W1 column-tile
                pl.BlockSpec((1, tn), lambda n, m: (0, n)),   # b1
                pl.BlockSpec((K, tn), lambda n, m: (0, n)),   # W2 column-tile
                pl.BlockSpec((1, tn), lambda n, m: (0, n)),   # b2
            ],
            out_specs=pl.BlockSpec((tm, tn), lambda n, m: (m, n)),
        ),
        compiler_params=pltpu.CompilerParams(
            dimension_semantics=("parallel", "parallel"),
            vmem_limit_bytes=vmem_limit,
        ),
        cost_estimate=cost,
    )(x2d, w1c, b1f, w2c, b2f)

    out = out[:M, :N]
    return out.reshape(*orig_shape[:-1], N)


if __name__ == "__main__":
    key = jax.random.PRNGKey(0)
    batch, seq, input_dim, output_dim = 2, 8, 32, 64

    k_x, k_w1, k_b1, k_w2, k_b2 = jax.random.split(key, 5)
    x = jax.random.normal(k_x, (batch, seq, input_dim), dtype=jnp.float32)

    # PyTorch stores W as (out, in); we keep the transposed (in, out) layout.
    bound = 1.0 / (input_dim ** 0.5)
    w1 = jax.random.uniform(k_w1, (input_dim, output_dim), jnp.float32, -bound, bound)
    b1 = jax.random.uniform(k_b1, (output_dim,), jnp.float32, -bound, bound)
    w2 = jax.random.uniform(k_w2, (input_dim, output_dim), jnp.float32, -bound, bound)
    b2 = jax.random.uniform(k_b2, (output_dim,), jnp.float32, -bound, bound)

    out = llama_swiglu(x, w1, b1, w2, b2)
    out = jax.block_until_ready(out)

    # Pure-JAX f32 reference (kernel feeds the MXU bf16 -> loosened tolerance).
    ref = (x @ w1 + b1) * jax.nn.sigmoid(x @ w2 + b2)
    assert out.shape == (batch, seq, output_dim)
    assert jnp.allclose(out, ref, atol=3e-2, rtol=3e-2), (
        float(jnp.max(jnp.abs(out - ref))))

    print("KERNEL_OK")
</pallas_src>

<mosaic_0001>
module attributes {stable_mosaic.version = 11 : i64} {
  func.func @_swiglu_kernel(%arg0: i32, %arg1: i32, %arg2: memref<16x32xbf16, #tpu.memory_space<vmem>>, %arg3: memref<32x128xbf16, #tpu.memory_space<vmem>>, %arg4: memref<1x128xf32, #tpu.memory_space<vmem>>, %arg5: memref<32x128xbf16, #tpu.memory_space<vmem>>, %arg6: memref<1x128xf32, #tpu.memory_space<vmem>>, %arg7: memref<16x128xf32, #tpu.memory_space<vmem>>) attributes {dimension_semantics = [#tpu.dimension_semantics<parallel>, #tpu.dimension_semantics<parallel>], iteration_bounds = array<i64: 1, 1>, scalar_prefetch = 0 : i64, scratch_operands = 0 : i64, tpu.core_type = #tpu.core_type<tc>, window_params = [{transform_indices = @transform_0, window_bounds = array<i64: 16, 32>}, {transform_indices = @transform_1, window_bounds = array<i64: 32, 128>}, {transform_indices = @transform_2, window_bounds = array<i64: 1, 128>}, {transform_indices = @transform_3, window_bounds = array<i64: 32, 128>}, {transform_indices = @transform_4, window_bounds = array<i64: 1, 128>}, {transform_indices = @transform_5, window_bounds = array<i64: 16, 128>}]} {
    %c0 = arith.constant 0 : index
    %c0_0 = arith.constant 0 : index
    %0 = vector.load %arg2[%c0, %c0_0] : memref<16x32xbf16, #tpu.memory_space<vmem>>, vector<16x32xbf16>
    %c0_1 = arith.constant 0 : index
    %c0_2 = arith.constant 0 : index
    %1 = vector.load %arg3[%c0_1, %c0_2] : memref<32x128xbf16, #tpu.memory_space<vmem>>, vector<32x128xbf16>
    %cst = arith.constant dense<0.000000e+00> : vector<16x128xf32>
    %2 = tpu.matmul %0, %1, %cst {dimension_numbers = #tpu.dot_dimension_numbers<[1], [0], [0], [1], [0, 0, 1, 1], [], []>} : vector<16x32xbf16>, vector<32x128xbf16>, vector<16x128xf32> -> vector<16x128xf32>
    %c0_3 = arith.constant 0 : index
    %c0_4 = arith.constant 0 : index
    %3 = vector.load %arg4[%c0_3, %c0_4] : memref<1x128xf32, #tpu.memory_space<vmem>>, vector<1x128xf32>
    %4 = vector.broadcast %3 : vector<1x128xf32> to vector<16x128xf32>
    %5 = arith.addf %2, %4 : vector<16x128xf32>
    %c0_5 = arith.constant 0 : index
    %c0_6 = arith.constant 0 : index
    %6 = vector.load %arg5[%c0_5, %c0_6] : memref<32x128xbf16, #tpu.memory_space<vmem>>, vector<32x128xbf16>
    %cst_7 = arith.constant dense<0.000000e+00> : vector<16x128xf32>
    %7 = tpu.matmul %0, %6, %cst_7 {dimension_numbers = #tpu.dot_dimension_numbers<[1], [0], [0], [1], [0, 0, 1, 1], [], []>} : vector<16x32xbf16>, vector<32x128xbf16>, vector<16x128xf32> -> vector<16x128xf32>
    %c0_8 = arith.constant 0 : index
    %c0_9 = arith.constant 0 : index
    %8 = vector.load %arg6[%c0_8, %c0_9] : memref<1x128xf32, #tpu.memory_space<vmem>>, vector<1x128xf32>
    %9 = vector.broadcast %8 : vector<1x128xf32> to vector<16x128xf32>
    %10 = arith.addf %7, %9 : vector<16x128xf32>
    %cst_10 = arith.constant 0.000000e+00 : f32
    %11 = vector.broadcast %cst_10 : f32 to vector<16x128xf32>
    %12 = arith.subf %11, %10 : vector<16x128xf32>
    %13 = math.exp %12 : vector<16x128xf32>
    %cst_11 = arith.constant 1.000000e+00 : f32
    %14 = vector.broadcast %cst_11 : f32 to vector<16x128xf32>
    %15 = arith.addf %14, %13 : vector<16x128xf32>
    %16 = tpu.reciprocal %15 {approx = true} : vector<16x128xf32> -> vector<16x128xf32>
    %17 = arith.mulf %5, %16 : vector<16x128xf32>
    %c0_12 = arith.constant 0 : index
    %c0_13 = arith.constant 0 : index
    %18 = vector.load %arg7[%c0_12, %c0_13] : memref<16x128xf32, #tpu.memory_space<vmem>>, vector<16x128xf32>
    tpu.vector_store %arg7[%c0_12, %c0_13], %17 {strides = array<i32>} : memref<16x128xf32, #tpu.memory_space<vmem>>, vector<16x128xf32>,
    return
  }
  func.func @transform_0(%arg0: i32, %arg1: i32) -> (i32, i32) {
    %c0_i32 = arith.constant 0 : i32
    %c0_i32_0 = arith.constant 0 : i32
    return %arg1, %c0_i32 : i32, i32
  }
  func.func @transform_1(%arg0: i32, %arg1: i32) -> (i32, i32) {
    %c0_i32 = arith.constant 0 : i32
    %c0_i32_0 = arith.constant 0 : i32
    return %c0_i32, %arg0 : i32, i32
  }
  func.func @transform_2(%arg0: i32, %arg1: i32) -> (i32, i32) {
    %c0_i32 = arith.constant 0 : i32
    %c0_i32_0 = arith.constant 0 : i32
    return %c0_i32, %arg0 : i32, i32
  }
  func.func @transform_3(%arg0: i32, %arg1: i32) -> (i32, i32) {
    %c0_i32 = arith.constant 0 : i32
    %c0_i32_0 = arith.constant 0 : i32
    return %c0_i32, %arg0 : i32, i32
  }
  func.func @transform_4(%arg0: i32, %arg1: i32) -> (i32, i32) {
    %c0_i32 = arith.constant 0 : i32
    %c0_i32_0 = arith.constant 0 : i32
    return %c0_i32, %arg0 : i32, i32
  }
  func.func @transform_5(%arg0: i32, %arg1: i32) -> (i32, i32) {
    %c0_i32 = arith.constant 0 : i32
    return %arg1, %arg0 : i32, i32
  }
}

</mosaic_0001>

<llo_original>
// kernel: tpu_custom_call.1
$region0: #{tpu_custom_call.1}
  #allocation0 [shape = 'u32[]', space=smem, size = 0x4, offset = 0x4, fixed_abs, tag = 'smem constant byte address 0x4 - core index']
  #allocation1 [shape = 'u32[144,128]{1,0:T(1,128)}', space=vmem, size = 0x12000, scoped, tag = 'internal scratch']
  %s0 = inlined_call_operand.hbm [shape: bf16[16,32], index: 0, kind: input, shape index: {}]
  %s1 = inlined_call_operand.hbm [shape: bf16[32,128], index: 1, kind: input, shape index: {}]
  %s2 = inlined_call_operand.vmem [shape: f32[1,128], index: 2, kind: input, shape index: {}]
  %s3 = inlined_call_operand.hbm [shape: bf16[32,128], index: 3, kind: input, shape index: {}]
  %s4 = inlined_call_operand.vmem [shape: f32[1,128], index: 4, kind: input, shape index: {}]
  %s5 = inlined_call_operand.hbm [shape: f32[16,128], index: 5, kind: output, shape index: {}]
  %s6 = sld [smem:[#allocation0]]
  $region42: #{tpu_custom_call.1} parent=0
    _
  %s8 = ssub.s32 1, %s6
  %s9 = scalar_select 0, %s8, %s6
  $region1: #{tpu_custom_call.1} parent=0
    #allocation2 [shape = 'u8[4096]{0}', space=vmem, size = 0x1000, scoped, tag = 'input window, operand 0, single buffered']
    #allocation3 [shape = 's32[1]{0}', space=sflag, size = 0x4, scoped, tag = 'scoped memory for tpu_custom_call.1']
    #allocation4 [shape = 's32[1]{0}', space=sflag, size = 0x4, scoped, tag = 'scoped memory for tpu_custom_call.1']
    #allocation5 [shape = 'u8[8192]{0}', space=vmem, size = 0x2000, scoped, tag = 'input window, operand 1, single buffered']
    #allocation6 [shape = 's32[1]{0}', space=sflag, size = 0x4, scoped, tag = 'scoped memory for tpu_custom_call.1']
    #allocation7 [shape = 'u8[8192]{0}', space=vmem, size = 0x2000, scoped, tag = 'input window, operand 3, single buffered']
    #allocation8 [shape = 'u8[8192]{0}', space=vmem, size = 0x2000, scoped, tag = 'output window, operand 0, single buffered']
    %10 = vsyncpa [#allocation3], 0
    %11 = vsyncpa [#allocation6], 0
    %12 = vsyncpa [#allocation4], 0
    // Predicated region
    $region2: #{tpu_custom_call.1} parent=1 // pred_check
      _
    $region3: #{tpu_custom_call.1} parent=1 // pred_check_branch
      %14 = sbr.rel (0) target = $region5
    $region4: #{tpu_custom_call.1} parent=1 // pred_region
      %s16 = ssub.s32 128, 128
      %17 = vsyncadd [#allocation3], %s16
      %s18 = sshll.u32 [#allocation2], 4
      %s19 = int_to_ptr.vmem [resolvable:$true] %s18
      %24 = dma.hbm_to_vmem [thread:$0]  %s0, 128, %s19, [#allocation3], 64, 64, 4
    $region5: #{tpu_custom_call.1} parent=1 // pred_fallthru
      _
    // Predicated region
    $region6: #{tpu_custom_call.1} parent=1 // pred_check
      _
    $region7: #{tpu_custom_call.1} parent=1 // pred_check_branch
      %26 = sbr.rel (0) target = $region9
    $region8: #{tpu_custom_call.1} parent=1 // pred_region
      %s28 = ssub.s32 256, 256
      %29 = vsyncadd [#allocation6], %s28
      %s30 = sshll.u32 [#allocation5], 4
      %s31 = int_to_ptr.vmem [resolvable:$true] %s30
      %36 = dma.hbm_to_vmem [thread:$0]  %s1, 256, %s31, [#allocation6], 64, 64, 4
    $region9: #{tpu_custom_call.1} parent=1 // pred_fallthru
      _
    // Predicated region
    $region10: #{tpu_custom_call.1} parent=1 // pred_check
      _
    $region11: #{tpu_custom_call.1} parent=1 // pred_check_branch
      %38 = sbr.rel (0) target = $region13
    $region12: #{tpu_custom_call.1} parent=1 // pred_region
      _
    $region13: #{tpu_custom_call.1} parent=1 // pred_fallthru
      _
    // Predicated region
    $region14: #{tpu_custom_call.1} parent=1 // pred_check
      _
    $region15: #{tpu_custom_call.1} parent=1 // pred_check_branch
      %40 = sbr.rel (0) target = $region17
    $region16: #{tpu_custom_call.1} parent=1 // pred_region
      %s42 = ssub.s32 256, 256
      %43 = vsyncadd [#allocation6], %s42
      %s44 = sshll.u32 [#allocation7], 4
      %s45 = int_to_ptr.vmem [resolvable:$true] %s44
      %50 = dma.hbm_to_vmem [thread:$0]  %s3, 256, %s45, [#allocation6], 64, 64, 4
    $region17: #{tpu_custom_call.1} parent=1 // pred_fallthru
      _
    // Predicated region
    $region18: #{tpu_custom_call.1} parent=1 // pred_check
      _
    $region19: #{tpu_custom_call.1} parent=1 // pred_check_branch
      %52 = sbr.rel (0) target = $region21
    $region20: #{tpu_custom_call.1} parent=1 // pred_region
      _
    $region21: #{tpu_custom_call.1} parent=1 // pred_fallthru
      _
    // Predicated region
    $region22: #{tpu_custom_call.1} parent=1 // pred_check
      _
    $region23: #{tpu_custom_call.1} parent=1 // pred_check_branch
      %54 = sbr.rel (0) target = $region25
    $region24: #{tpu_custom_call.1} parent=1 // pred_region
      %55 = dma.done [#allocation3], 128
    $region25: #{tpu_custom_call.1} parent=1 // pred_fallthru
      _
    // Predicated region
    $region26: #{tpu_custom_call.1} parent=1 // pred_check
      _
    $region27: #{tpu_custom_call.1} parent=1 // pred_check_branch
      %57 = sbr.rel (0) target = $region29
    $region28: #{tpu_custom_call.1} parent=1 // pred_region
      %58 = dma.done [#allocation6], 256
    $region29: #{tpu_custom_call.1} parent=1 // pred_fallthru
      _
    // Predicated region
    $region30: #{tpu_custom_call.1} parent=1 // pred_check
      _
    $region31: #{tpu_custom_call.1} parent=1 // pred_check_branch
      %60 = sbr.rel (0) target = $region33
    $region32: #{tpu_custom_call.1} parent=1 // pred_region
      %61 = dma.done [#allocation6], 256
    $region33: #{tpu_custom_call.1} parent=1 // pred_fallthru
      _
    %v63 = vld [vmem:[#allocation2] sm:$0xf]
    %v64 = vld [vmem:[#allocation2 + $0x4] sm:$0xf]
    %v65 = vld [vmem:[#allocation5] sm:$0xf]
    %v66 = vld [vmem:[#allocation5 + $0x4] sm:$0xf]
    %v67 = vld [vmem:[#allocation5 + $0x8] sm:$0xf]
    %v68 = vld [vmem:[#allocation5 + $0xc] sm:$0xf]
    %v69 = vld [vmem:[%s2] sm:$0x1]
    %v71 = vlaneseq
    %v72 = vshrl.u32 %v71, 7
    %v73 = vsub.s32 0, %v72
    %v74 = vrot.slane %v69, %v73
    %v78 = vunpack.c.l.b16 %v63
    %v79 = vunpack.c.l.b16 %v64
    %v80 = vpack.c.b16 %v79, %v78
    %v85 = vunpack.c.l.b16 %v65
    %v86 = vunpack.c.l.b16 %v66
    %v87 = vunpack.c.l.b16 %v67
    %v88 = vunpack.c.l.b16 %v68
    %v89 = vpack.c.b16 %v86, %v85
    %v90 = vpack.c.b16 %v88, %v87
    %vm93 = vcmask 261120
    %v95 = vsel %vm93, %v80, 0
    %97 = vmatprep.subr.bf16.mxu0 0
    %98 = vmatpush1.bf16.msra.mxu0 0
    %99 = vmatprep.subr.bf16.mxu0 0
    %100 = vmatpush1.bf16.msra.mxu0 0
    %101 = vmatprep.subr.bf16.mxu0 0
    %102 = vmatpush1.bf16.msra.mxu0 0
    %103 = vmatprep.subr.bf16.mxu0 0
    %104 = vmatpush1.bf16.msra.mxu0 0
    %105 = vmatprep.subr.bf16.mxu0 0
    %106 = vmatpush1.bf16.msra.mxu0 0
    %107 = vmatprep.subr.bf16.mxu0 0
    %108 = vmatpush1.bf16.msra.mxu0 0
    %109 = vmatprep.subr.bf16.mxu0 0
    %110 = vmatpush1.bf16.msra.mxu0 %v90
    %111 = vmatprep.subr.bf16.mxu0 0
    %112 = vmatpush1.bf16.msra.mxu0 %v89
    %113 = vmatprep.subr.bf16.mxu0 0
    %114 = vmatpush2.bf16.msra.mxu0 0
    %115 = vmatprep.subr.bf16.mxu0 0
    %116 = vmatpush2.bf16.msra.mxu0 0
    %117 = vmatprep.subr.bf16.mxu0 0
    %118 = vmatpush2.bf16.msra.mxu0 0
    %119 = vmatprep.subr.bf16.mxu0 0
    %120 = vmatpush2.bf16.msra.mxu0 0
    %121 = vmatprep.subr.bf16.mxu0 0
    %122 = vmatpush2.bf16.msra.mxu0 0
    %123 = vmatprep.subr.bf16.mxu0 0
    %124 = vmatpush2.bf16.msra.mxu0 0
    %125 = vmatprep.subr.bf16.mxu0 0
    %126 = vmatpush2.bf16.msra.mxu0 0
    %127 = vmatprep.subr.bf16.mxu0 0
    %128 = vmatpush2.bf16.msra.mxu0 0
    %129 = vmatprep.mubr.bf16.mxu0 0
    %130 = vmatmul.mubr.bf16.gmra.mxu0 %v95
    %v131 = vpop.f32.mrf.mxu0
    %v132 = vadd.f32 %v74, %v131
    %v133 = vpop.f32.mrf.mxu0
    %v134 = vpop.f32.mrf.mxu0
    %v135 = vadd.f32 %v74, %v134
    %v136 = vpop.f32.mrf.mxu0
    %137 = vdwg.mxu0
    %v138 = vld [vmem:[#allocation7] sm:$0xf]
    %v139 = vld [vmem:[#allocation7 + $0x4] sm:$0xf]
    %v140 = vld [vmem:[#allocation7 + $0x8] sm:$0xf]
    %v141 = vld [vmem:[#allocation7 + $0xc] sm:$0xf]
    %v142 = vld [vmem:[%s4] sm:$0x1]
    %v144 = vlaneseq
    %v145 = vshrl.u32 %v144, 7
    %v146 = vsub.s32 0, %v145
    %v147 = vrot.slane %v142, %v146
    %v153 = vunpack.c.l.b16 %v138
    %v154 = vunpack.c.l.b16 %v139
    %v155 = vunpack.c.l.b16 %v140
    %v156 = vunpack.c.l.b16 %v141
    %v157 = vpack.c.b16 %v154, %v153
    %v158 = vpack.c.b16 %v156, %v155
    %161 = vmatprep.subr.bf16.mxu0 0
    %162 = vmatpush1.bf16.msra.mxu0 0
    %163 = vmatprep.subr.bf16.mxu0 0
    %164 = vmatpush1.bf16.msra.mxu0 0
    %165 = vmatprep.subr.bf16.mxu0 0
    %166 = vmatpush1.bf16.msra.mxu0 0
    %167 = vmatprep.subr.bf16.mxu0 0
    %168 = vmatpush1.bf16.msra.mxu0 0
    %169 = vmatprep.subr.bf16.mxu0 0
    %170 = vmatpush1.bf16.msra.mxu0 0
    %171 = vmatprep.subr.bf16.mxu0 0
    %172 = vmatpush1.bf16.msra.mxu0 0
    %173 = vmatprep.subr.bf16.mxu0 0
    %174 = vmatpush1.bf16.msra.mxu0 %v158
    %175 = vmatprep.subr.bf16.mxu0 0
    %176 = vmatpush1.bf16.msra.mxu0 %v157
    %177 = vmatprep.subr.bf16.mxu0 0
    %178 = vmatpush2.bf16.msra.mxu0 0
    %179 = vmatprep.subr.bf16.mxu0 0
    %180 = vmatpush2.bf16.msra.mxu0 0
    %181 = vmatprep.subr.bf16.mxu0 0
    %182 = vmatpush2.bf16.msra.mxu0 0
    %183 = vmatprep.subr.bf16.mxu0 0
    %184 = vmatpush2.bf16.msra.mxu0 0
    %185 = vmatprep.subr.bf16.mxu0 0
    %186 = vmatpush2.bf16.msra.mxu0 0
    %187 = vmatprep.subr.bf16.mxu0 0
    %188 = vmatpush2.bf16.msra.mxu0 0
    %189 = vmatprep.subr.bf16.mxu0 0
    %190 = vmatpush2.bf16.msra.mxu0 0
    %191 = vmatprep.subr.bf16.mxu0 0
    %192 = vmatpush2.bf16.msra.mxu0 0
    %193 = vmatprep.mubr.bf16.mxu0 0
    %194 = vmatmul.mubr.bf16.gmra.mxu0 %v95
    %v195 = vpop.f32.mrf.mxu0
    %v196 = vadd.f32 %v147, %v195
    %v197 = vpop.f32.mrf.mxu0
    %v198 = vpop.f32.mrf.mxu0
    %v199 = vadd.f32 %v147, %v198
    %v200 = vpop.f32.mrf.mxu0
    %201 = vdwg.mxu0
    %v202 = vsub.f32 0.0, %v196
    %v203 = vsub.f32 0.0, %v199
    %v204 = vmul.f32 %v202, 1.442695
    %v205 = vpow.pop %v204
    %v206 = vmul.f32 %v203, 1.442695
    %v207 = vpow.pop %v206
    %v208 = vadd.f32 %v205, 1.0
    %v209 = vadd.f32 %v207, 1.0
    %v210 = vrcp.pop %v208
    %v211 = vrcp.pop %v209
    %v212 = vmul.f32 %v132, %v210
    %v213 = vmul.f32 %v135, %v211
    %214 = vst [vmem:[#allocation8] sm:$0xff] %v212
    %215 = vst [vmem:[#allocation8 + $0x8] sm:$0xff] %v213
    // Predicated region
    $region34: #{tpu_custom_call.1} parent=1 // pred_check
      _
    $region35: #{tpu_custom_call.1} parent=1 // pred_check_branch
      %217 = sbr.rel (0) target = $region37
    $region36: #{tpu_custom_call.1} parent=1 // pred_region
      %s219 = ssub.s32 256, 256
      %220 = vsyncadd [#allocation4], %s219
      %s221 = sshll.u32 [#allocation8], 4
      %s222 = int_to_ptr.vmem [resolvable:$true] %s221
      %227 = dma.vmem_to_hbm [thread:$0]  %s222, 256, %s5, [#allocation4], 128, 128, 8
    $region37: #{tpu_custom_call.1} parent=1 // pred_fallthru
      _
    // Predicated region
    $region38: #{tpu_custom_call.1} parent=1 // pred_check
      _
    $region39: #{tpu_custom_call.1} parent=1 // pred_check_branch
      %229 = sbr.rel (0) target = $region41
    $region40: #{tpu_custom_call.1} parent=1 // pred_region
      %230 = dma.done [#allocation4], 256
    $region41: #{tpu_custom_call.1} parent=1 // pred_fallthru
      _
    %231 = vsyncpa [#allocation3], 1
    %232 = vsyncpa [#allocation6], 1
    %233 = vsyncpa [#allocation4], 1

</llo_original>
